<compile_context>
chip_gen: v5e
topology: v5e:2x2
jax: 0.10.0
libtpu: 0.0.40
codegen_flags: <defaults>
</compile_context>

<pallas_src>
import numpy as np
import jax
import jax.numpy as jnp
from jax import lax
from jax.experimental import pallas as pl
from jax.experimental.pallas import tpu as pltpu  # noqa: F401  (TPU backend assumed)

N_POINTS = 10      # module default num_points
NP = 16            # padded row count for "self" arrays (multiple of 8 sublanes)


# --------------------------------------------------------------------------- kernel
def _fused_losses_kernel(ps_ref, psn_ref, pst_ref, pts_ref, ptsp_ref, ptsn_ref,
                         init_ref, opst_ref, mind_ref, w_ref, u0_ref,
                         fixm_ref, segm_ref, noisem_ref, rowm_ref, out_ref):
    """Emits [fixed, intersect, dist, dir, noise, 0, 0, 0] into a (1, 8) row."""
    ps = ps_ref[...]          # (NP, 3) current lifted points [x, z, y]
    pst = pst_ref[...]        # (3, NP) same, transposed (row provider)
    pts = pts_ref[...]        # (NP, 2) current learnable points
    rowm = rowm_ref[...]      # (NP, 1) 1 for valid (non-pad) rows

    def pairwise_dist(cols, rows_t):
        # d[i, j] = || cols[i, :] - rows_t[:, j] ||_2 built with 3 VPU broadcast
        # passes (column bcast - row bcast); exact, non-negative by construction.
        d2 = None
        for c in range(cols.shape[1]):
            diff = cols[:, c:c + 1] - rows_t[c:c + 1, :]
            term = diff * diff
            d2 = term if d2 is None else d2 + term
        # tiny eps keeps the sqrt gradient finite at coincident points
        return jnp.sqrt(d2 + 1e-20)

    # fixed_loss -- TODO(synk): PufferZone source not provided; masked squared displacement.
    dpin = pts - init_ref[...]
    fixed = jnp.sum(fixm_ref[...] * jnp.sum(dpin * dpin, axis=-1, keepdims=True))

    # intersect_loss -- sum over ALL other connections at once:
    # sum_{i,j} relu(min_dist[j] - ||ps[i] - ops_all[j]||)   (torch broadcast of (N,)-(N,N))
    d_o = pairwise_dist(ps, opst_ref[...])                       # (NP, K*N)
    intersect = jnp.sum(rowm * jnp.maximum(mind_ref[...] - d_o, 0.0))

    # dist_loss -- WeightedEuclideanDistance: sum(W * cdist(ps, ps)), W zero-padded.
    d_s = pairwise_dist(ps, pst)                                 # (NP, NP)
    dist = jnp.sum(w_ref[...] * d_s)

    # dir_loss -- TODO(synk): WeightedDirection source not provided; 1 - cos(cur seg, init seg).
    seg = psn_ref[...] - ps                                      # seg[i] = ps[i+1] - ps[i]
    nrm = jnp.sqrt(jnp.sum(seg * seg, axis=-1, keepdims=True) + 1e-12)
    cos = jnp.sum((seg / nrm) * u0_ref[...], axis=-1, keepdims=True)
    dirv = jnp.sum(segm_ref[...] * (1.0 - cos))

    # noise_loss -- TODO(synk): noise_reduction_loss source not provided; squared 2nd differences.
    sd = ptsp_ref[...] - 2.0 * pts + ptsn_ref[...]               # p[i-1] - 2 p[i] + p[i+1]
    noise = jnp.sum(noisem_ref[...] * jnp.sum(sd * sd, axis=-1, keepdims=True))

    lane = lax.broadcasted_iota(jnp.int32, (1, 8), 1)
    out_ref[...] = (jnp.where(lane == 0, fixed, 0.0)
                    + jnp.where(lane == 1, intersect, 0.0)
                    + jnp.where(lane == 2, dist, 0.0)
                    + jnp.where(lane == 3, dirv, 0.0)
                    + jnp.where(lane == 4, noise, 0.0)).astype(jnp.float32)


# --------------------------------------------------------------------------- jitted wrapper
def _pad_rows(a, rows):
    return jnp.pad(a.astype(jnp.float32), ((0, rows - a.shape[0]), (0, 0)))


@jax.jit
def _fused_forward(points, init_points, y_vals, radii, other_pts, other_rad, scale,
                   w_pad, u0_pad, fixmask, segmask, noisemask, rowmask):
    n = points.shape[0]
    k = other_pts.shape[0]
    m = k * n

    ps = jnp.concatenate([points, y_vals[:, None]], axis=-1)          # (N, 3)
    ps_pad = _pad_rows(ps, NP)                                        # (NP, 3)
    pts_pad = _pad_rows(points, NP)                                   # (NP, 2)
    init_pad = _pad_rows(init_points, NP)                             # (NP, 2)
    ps_t = jnp.transpose(ps_pad)                                      # (3, NP)
    # neighbor-shifted copies (pad/wrap rows are killed by the masks in-kernel)
    ps_next = jnp.roll(ps_pad, -1, axis=0)
    pts_prev = jnp.roll(pts_pad, 1, axis=0)
    pts_next = jnp.roll(pts_pad, -1, axis=0)

    # all other connections batched into one column slab (the torch code appends
    # *self.y_vals* to the other points too — reproduced here)
    y_b = jnp.broadcast_to(y_vals[None, :, None], (k, n, 1))
    ops3 = jnp.concatenate([other_pts, y_b], axis=-1)                 # (K, N, 3)
    ops_t = jnp.transpose(ops3, (2, 0, 1)).reshape(3, m)              # (3, K*N)
    mind = ((radii[None, :] + other_rad) * scale).reshape(1, m)       # (1, K*N)

    shapes = [(NP, 3), (NP, 3), (3, NP), (NP, 2), (NP, 2), (NP, 2), (NP, 2),
              (3, m), (1, m), (NP, NP), (NP, 3),
              (NP, 1), (NP, 1), (NP, 1), (NP, 1)]
    out = pl.pallas_call(
        _fused_losses_kernel,
        out_shape=jax.ShapeDtypeStruct((1, 8), jnp.float32),
        grid=(1,),  # single fused invocation; everything fits in a few vregs
        in_specs=[pl.BlockSpec(s, lambda i: (0, 0)) for s in shapes],
        out_specs=pl.BlockSpec((1, 8), lambda i: (0, 0)),
    )(ps_pad, ps_next, ps_t, pts_pad, pts_prev, pts_next, init_pad,
      ops_t, mind, w_pad, u0_pad, fixmask, segmask, noisemask, rowmask)
    return out[0, 0], out[0, 1], out[0, 2], out[0, 3], out[0, 4]


# --------------------------------------------------------------------------- module construction (glue)
class Circle:
    def __init__(self, x, y, r):
        self.x, self.y, self.r = float(x), float(y), float(r)


def _pad2(a, shape, value=0.0):
    out = np.full(shape, value, np.float32)
    out[: a.shape[0], : a.shape[1]] = a
    return out


def _make_points(c1, c2, height, num_points, puffer):
    init_y = np.array([-0.5 * height, -0.5 * height + puffer,
                       0.5 * height - puffer, 0.5 * height])
    init_x = np.array([c1.x, c1.x + (c2.x - c1.x) * 0.1 * c1.r,
                       c2.x - (c2.x - c1.x) * 0.1 * c2.r, c2.x])
    init_z = np.array([c1.y, c1.y + (c2.y - c1.y) * 0.1 * c1.r,
                       c2.y - (c2.y - c1.y) * 0.1 * c2.r, c2.y])
    # AxisValues: evenly spaced y samples over the connection extent.
    y = np.linspace(init_y[0], init_y[-1], num_points)
    # TODO(synk): InterpolatingValues source not provided; using linear interpolation.
    x = np.interp(y, init_y, init_x)
    z = np.interp(y, init_y, init_z)
    r = np.interp(y, np.array([-height, -height / 2.0, height / 2.0, height]),
                  np.array([c1.r, c1.r, c2.r, c2.r]))
    return x, y, z, r


class NeuralConnectionPallas:
    def __init__(self, circles, height=5.0, num_points=N_POINTS, puffer=1.0):
        c1, c2 = circles
        self.num_points = num_points
        x, y, z, r = _make_points(c1, c2, height, num_points, puffer)
        self.radii = jnp.asarray(r, jnp.float32)                       # (N,)
        self.y_vals = jnp.asarray(y, jnp.float32)                      # (N,)
        init_points = np.stack([x, z], axis=-1).astype(np.float32)     # (N, 2) = th.tensor([x,z]).T
        self.init_points = jnp.asarray(init_points)
        self.points = jnp.asarray(init_points)                         # nn.Parameter equivalent

        n = num_points
        low, high = -0.5 * height + puffer, 0.5 * height - puffer
        fixmask = ((y < low) | (y > high)).astype(np.float32)          # puffer bands
        # TODO(synk): WeightedEuclideanDistance weights not provided; using 1/(1+|i-j|), zero diag.
        idx = np.arange(n)
        w = 1.0 / (1.0 + np.abs(idx[:, None] - idx[None, :]).astype(np.float32))
        np.fill_diagonal(w, 0.0)
        ps0 = np.concatenate([init_points, y[:, None].astype(np.float32)], axis=-1)  # (N, 3)
        seg0 = ps0[1:] - ps0[:-1]
        u0 = seg0 / (np.linalg.norm(seg0, axis=-1, keepdims=True) + 1e-12)
        segmask = np.zeros(n, np.float32); segmask[: n - 1] = 1.0
        noisemask = np.zeros(n, np.float32); noisemask[1: n - 1] = 1.0
        rowmask = np.ones(n, np.float32)

        # precomputed, padded constants (hoisted out of forward per review)
        self._w_pad = jnp.asarray(_pad2(w, (NP, NP)))
        self._u0_pad = jnp.asarray(_pad2(u0, (NP, 3)))
        self._fixmask = jnp.asarray(_pad2(fixmask.reshape(n, 1), (NP, 1)))
        self._segmask = jnp.asarray(_pad2(segmask.reshape(n, 1), (NP, 1)))
        self._noisemask = jnp.asarray(_pad2(noisemask.reshape(n, 1), (NP, 1)))
        self._rowmask = jnp.asarray(_pad2(rowmask.reshape(n, 1), (NP, 1)))

    def forward(self, other_connections, scale=1.0):
        if other_connections:
            other_pts = jnp.stack([jnp.asarray(o.points, jnp.float32)
                                   for o in other_connections])        # (K, N, 2)
            other_rad = jnp.stack([jnp.asarray(o.radii, jnp.float32)
                                   for o in other_connections])        # (K, N)
        else:  # no neighbors: force min_dist == 0 so the relu term vanishes
            other_pts = jnp.zeros((1, self.num_points, 2), jnp.float32)
            other_rad = -self.radii[None, :]
        return _fused_forward(self.points, self.init_points, self.y_vals, self.radii,
                              other_pts, other_rad, jnp.float32(scale),
                              self._w_pad, self._u0_pad, self._fixmask,
                              self._segmask, self._noisemask, self._rowmask)


# --------------------------------------------------------------------------- demo
if __name__ == "__main__":
    conn = NeuralConnectionPallas((Circle(0.0, 0.0, 0.5), Circle(2.0, 1.0, 0.7)))
    oc1 = NeuralConnectionPallas((Circle(1.0, -1.0, 0.4), Circle(-1.0, 2.0, 0.6)))
    oc2 = NeuralConnectionPallas((Circle(-2.0, 0.5, 0.3), Circle(1.5, -1.5, 0.5)))

    # deterministic perturbation of the learnable points (as if mid-optimization)
    k0, k1, k2 = jax.random.split(jax.random.PRNGKey(0), 3)
    conn.points = conn.points + 0.05 * jax.random.normal(k0, conn.points.shape, jnp.float32)
    oc1.points = oc1.points + 0.05 * jax.random.normal(k1, oc1.points.shape, jnp.float32)
    oc2.points = oc2.points + 0.05 * jax.random.normal(k2, oc2.points.shape, jnp.float32)

    losses = conn.forward([oc1, oc2], scale=1.0)
    losses = jax.block_until_ready(losses)
    _ = [float(v) for v in losses]   # (fixed, intersect, dist, dir, noise) scalars
    print("KERNEL_OK")
</pallas_src>

<mosaic_0001>
module attributes {stable_mosaic.version = 11 : i64} {
  func.func @_fused_losses_kernel(%arg0: i32, %arg1: memref<16x3xf32, #tpu.memory_space<vmem>>, %arg2: memref<16x3xf32, #tpu.memory_space<vmem>>, %arg3: memref<3x16xf32, #tpu.memory_space<vmem>>, %arg4: memref<16x2xf32, #tpu.memory_space<vmem>>, %arg5: memref<16x2xf32, #tpu.memory_space<vmem>>, %arg6: memref<16x2xf32, #tpu.memory_space<vmem>>, %arg7: memref<16x2xf32, #tpu.memory_space<vmem>>, %arg8: memref<3x20xf32, #tpu.memory_space<vmem>>, %arg9: memref<1x20xf32, #tpu.memory_space<vmem>>, %arg10: memref<16x16xf32, #tpu.memory_space<vmem>>, %arg11: memref<16x3xf32, #tpu.memory_space<vmem>>, %arg12: memref<16x1xf32, #tpu.memory_space<vmem>>, %arg13: memref<16x1xf32, #tpu.memory_space<vmem>>, %arg14: memref<16x1xf32, #tpu.memory_space<vmem>>, %arg15: memref<16x1xf32, #tpu.memory_space<vmem>>, %arg16: memref<1x8xf32, #tpu.memory_space<vmem>>) attributes {dimension_semantics = [#tpu.dimension_semantics<arbitrary>], iteration_bounds = array<i64: 1>, scalar_prefetch = 0 : i64, scratch_operands = 0 : i64, tpu.core_type = #tpu.core_type<tc>, window_params = [{pipeline_mode = #tpu.pipeline_mode<synchronous>, transform_indices = @transform_0, window_bounds = array<i64: 16, 3>}, {pipeline_mode = #tpu.pipeline_mode<synchronous>, transform_indices = @transform_1, window_bounds = array<i64: 16, 3>}, {pipeline_mode = #tpu.pipeline_mode<synchronous>, transform_indices = @transform_2, window_bounds = array<i64: 3, 16>}, {pipeline_mode = #tpu.pipeline_mode<synchronous>, transform_indices = @transform_3, window_bounds = array<i64: 16, 2>}, {pipeline_mode = #tpu.pipeline_mode<synchronous>, transform_indices = @transform_4, window_bounds = array<i64: 16, 2>}, {pipeline_mode = #tpu.pipeline_mode<synchronous>, transform_indices = @transform_5, window_bounds = array<i64: 16, 2>}, {pipeline_mode = #tpu.pipeline_mode<synchronous>, transform_indices = @transform_6, window_bounds = array<i64: 16, 2>}, {pipeline_mode = #tpu.pipeline_mode<synchronous>, transform_indices = @transform_7, window_bounds = array<i64: 3, 20>}, {pipeline_mode = #tpu.pipeline_mode<synchronous>, transform_indices = @transform_8, window_bounds = array<i64: 1, 20>}, {pipeline_mode = #tpu.pipeline_mode<synchronous>, transform_indices = @transform_9, window_bounds = array<i64: 16, 16>}, {pipeline_mode = #tpu.pipeline_mode<synchronous>, transform_indices = @transform_10, window_bounds = array<i64: 16, 3>}, {pipeline_mode = #tpu.pipeline_mode<synchronous>, transform_indices = @transform_11, window_bounds = array<i64: 16, 1>}, {pipeline_mode = #tpu.pipeline_mode<synchronous>, transform_indices = @transform_12, window_bounds = array<i64: 16, 1>}, {pipeline_mode = #tpu.pipeline_mode<synchronous>, transform_indices = @transform_13, window_bounds = array<i64: 16, 1>}, {pipeline_mode = #tpu.pipeline_mode<synchronous>, transform_indices = @transform_14, window_bounds = array<i64: 16, 1>}, {pipeline_mode = #tpu.pipeline_mode<synchronous>, transform_indices = @transform_15, window_bounds = array<i64: 1, 8>}]} {
    %c0 = arith.constant 0 : index
    %c0_0 = arith.constant 0 : index
    %0 = vector.load %arg1[%c0, %c0_0] : memref<16x3xf32, #tpu.memory_space<vmem>>, vector<16x3xf32>
    %c0_1 = arith.constant 0 : index
    %c0_2 = arith.constant 0 : index
    %1 = vector.load %arg3[%c0_1, %c0_2] : memref<3x16xf32, #tpu.memory_space<vmem>>, vector<3x16xf32>
    %c0_3 = arith.constant 0 : index
    %c0_4 = arith.constant 0 : index
    %2 = vector.load %arg4[%c0_3, %c0_4] : memref<16x2xf32, #tpu.memory_space<vmem>>, vector<16x2xf32>
    %c0_5 = arith.constant 0 : index
    %c0_6 = arith.constant 0 : index
    %3 = vector.load %arg15[%c0_5, %c0_6] : memref<16x1xf32, #tpu.memory_space<vmem>>, vector<16x1xf32>
    %c0_7 = arith.constant 0 : index
    %c0_8 = arith.constant 0 : index
    %4 = vector.load %arg7[%c0_7, %c0_8] : memref<16x2xf32, #tpu.memory_space<vmem>>, vector<16x2xf32>
    %5 = arith.subf %2, %4 : vector<16x2xf32>
    %c0_9 = arith.constant 0 : index
    %c0_10 = arith.constant 0 : index
    %6 = vector.load %arg12[%c0_9, %c0_10] : memref<16x1xf32, #tpu.memory_space<vmem>>, vector<16x1xf32>
    %7 = arith.mulf %5, %5 : vector<16x2xf32>
    %cst = arith.constant dense<0.000000e+00> : vector<16xf32>
    %8 = vector.multi_reduction <add>, %7, %cst [1] : vector<16x2xf32> to vector<16xf32>
    %9 = vector.shape_cast %8 : vector<16xf32> to vector<16x1xf32>
    %10 = arith.mulf %6, %9 : vector<16x1xf32>
    %11 = vector.shape_cast %10 : vector<16x1xf32> to vector<1x16x1xf32>
    %cst_11 = arith.constant dense<0.000000e+00> : vector<1xf32>
    %12 = vector.multi_reduction <add>, %11, %cst_11 [1, 2] : vector<1x16x1xf32> to vector<1xf32>
    %13 = vector.shape_cast %12 : vector<1xf32> to vector<1x1x1xf32>
    %14 = vector.extract %13[0, 0, 0] : f32 from vector<1x1x1xf32>
    %c0_12 = arith.constant 0 : index
    %c0_13 = arith.constant 0 : index
    %15 = vector.load %arg8[%c0_12, %c0_13] : memref<3x20xf32, #tpu.memory_space<vmem>>, vector<3x20xf32>
    %16 = vector.extract_strided_slice %0 {offsets = [0, 0], sizes = [16, 1], strides = [1, 1]} : vector<16x3xf32> to vector<16x1xf32>
    %17 = vector.extract_strided_slice %15 {offsets = [0, 0], sizes = [1, 20], strides = [1, 1]} : vector<3x20xf32> to vector<1x20xf32>
    %18 = vector.broadcast %16 : vector<16x1xf32> to vector<16x20xf32>
    %19 = vector.broadcast %17 : vector<1x20xf32> to vector<16x20xf32>
    %20 = arith.subf %18, %19 : vector<16x20xf32>
    %21 = arith.mulf %20, %20 : vector<16x20xf32>
    %22 = vector.extract_strided_slice %0 {offsets = [0, 1], sizes = [16, 1], strides = [1, 1]} : vector<16x3xf32> to vector<16x1xf32>
    %23 = vector.extract_strided_slice %15 {offsets = [1, 0], sizes = [1, 20], strides = [1, 1]} : vector<3x20xf32> to vector<1x20xf32>
    %24 = vector.broadcast %22 : vector<16x1xf32> to vector<16x20xf32>
    %25 = vector.broadcast %23 : vector<1x20xf32> to vector<16x20xf32>
    %26 = arith.subf %24, %25 : vector<16x20xf32>
    %27 = arith.mulf %26, %26 : vector<16x20xf32>
    %28 = arith.addf %21, %27 : vector<16x20xf32>
    %29 = vector.extract_strided_slice %0 {offsets = [0, 2], sizes = [16, 1], strides = [1, 1]} : vector<16x3xf32> to vector<16x1xf32>
    %30 = vector.extract_strided_slice %15 {offsets = [2, 0], sizes = [1, 20], strides = [1, 1]} : vector<3x20xf32> to vector<1x20xf32>
    %31 = vector.broadcast %29 : vector<16x1xf32> to vector<16x20xf32>
    %32 = vector.broadcast %30 : vector<1x20xf32> to vector<16x20xf32>
    %33 = arith.subf %31, %32 : vector<16x20xf32>
    %34 = arith.mulf %33, %33 : vector<16x20xf32>
    %35 = arith.addf %28, %34 : vector<16x20xf32>
    %cst_14 = arith.constant 9.99999968E-21 : f32
    %36 = vector.broadcast %cst_14 : f32 to vector<16x20xf32>
    %37 = arith.addf %35, %36 : vector<16x20xf32>
    %38 = math.sqrt %37 : vector<16x20xf32>
    %c0_15 = arith.constant 0 : index
    %c0_16 = arith.constant 0 : index
    %39 = vector.load %arg9[%c0_15, %c0_16] : memref<1x20xf32, #tpu.memory_space<vmem>>, vector<1x20xf32>
    %40 = vector.broadcast %39 : vector<1x20xf32> to vector<16x20xf32>
    %41 = arith.subf %40, %38 : vector<16x20xf32>
    %cst_17 = arith.constant 0.000000e+00 : f32
    %42 = vector.broadcast %cst_17 : f32 to vector<16x20xf32>
    %43 = arith.maximumf %41, %42 : vector<16x20xf32>
    %44 = vector.broadcast %3 : vector<16x1xf32> to vector<16x20xf32>
    %45 = arith.mulf %44, %43 : vector<16x20xf32>
    %46 = vector.shape_cast %45 : vector<16x20xf32> to vector<1x16x20xf32>
    %cst_18 = arith.constant dense<0.000000e+00> : vector<1xf32>
    %47 = vector.multi_reduction <add>, %46, %cst_18 [1, 2] : vector<1x16x20xf32> to vector<1xf32>
    %48 = vector.shape_cast %47 : vector<1xf32> to vector<1x1x1xf32>
    %49 = vector.extract %48[0, 0, 0] : f32 from vector<1x1x1xf32>
    %50 = vector.extract_strided_slice %0 {offsets = [0, 0], sizes = [16, 1], strides = [1, 1]} : vector<16x3xf32> to vector<16x1xf32>
    %51 = vector.extract_strided_slice %1 {offsets = [0, 0], sizes = [1, 16], strides = [1, 1]} : vector<3x16xf32> to vector<1x16xf32>
    %52 = vector.broadcast %50 : vector<16x1xf32> to vector<16x16xf32>
    %53 = vector.broadcast %51 : vector<1x16xf32> to vector<16x16xf32>
    %54 = arith.subf %52, %53 : vector<16x16xf32>
    %55 = arith.mulf %54, %54 : vector<16x16xf32>
    %56 = vector.extract_strided_slice %0 {offsets = [0, 1], sizes = [16, 1], strides = [1, 1]} : vector<16x3xf32> to vector<16x1xf32>
    %57 = vector.extract_strided_slice %1 {offsets = [1, 0], sizes = [1, 16], strides = [1, 1]} : vector<3x16xf32> to vector<1x16xf32>
    %58 = vector.broadcast %56 : vector<16x1xf32> to vector<16x16xf32>
    %59 = vector.broadcast %57 : vector<1x16xf32> to vector<16x16xf32>
    %60 = arith.subf %58, %59 : vector<16x16xf32>
    %61 = arith.mulf %60, %60 : vector<16x16xf32>
    %62 = arith.addf %55, %61 : vector<16x16xf32>
    %63 = vector.extract_strided_slice %0 {offsets = [0, 2], sizes = [16, 1], strides = [1, 1]} : vector<16x3xf32> to vector<16x1xf32>
    %64 = vector.extract_strided_slice %1 {offsets = [2, 0], sizes = [1, 16], strides = [1, 1]} : vector<3x16xf32> to vector<1x16xf32>
    %65 = vector.broadcast %63 : vector<16x1xf32> to vector<16x16xf32>
    %66 = vector.broadcast %64 : vector<1x16xf32> to vector<16x16xf32>
    %67 = arith.subf %65, %66 : vector<16x16xf32>
    %68 = arith.mulf %67, %67 : vector<16x16xf32>
    %69 = arith.addf %62, %68 : vector<16x16xf32>
    %cst_19 = arith.constant 9.99999968E-21 : f32
    %70 = vector.broadcast %cst_19 : f32 to vector<16x16xf32>
    %71 = arith.addf %69, %70 : vector<16x16xf32>
    %72 = math.sqrt %71 : vector<16x16xf32>
    %c0_20 = arith.constant 0 : index
    %c0_21 = arith.constant 0 : index
    %73 = vector.load %arg10[%c0_20, %c0_21] : memref<16x16xf32, #tpu.memory_space<vmem>>, vector<16x16xf32>
    %74 = arith.mulf %73, %72 : vector<16x16xf32>
    %75 = vector.shape_cast %74 : vector<16x16xf32> to vector<1x16x16xf32>
    %cst_22 = arith.constant dense<0.000000e+00> : vector<1xf32>
    %76 = vector.multi_reduction <add>, %75, %cst_22 [1, 2] : vector<1x16x16xf32> to vector<1xf32>
    %77 = vector.shape_cast %76 : vector<1xf32> to vector<1x1x1xf32>
    %78 = vector.extract %77[0, 0, 0] : f32 from vector<1x1x1xf32>
    %c0_23 = arith.constant 0 : index
    %c0_24 = arith.constant 0 : index
    %79 = vector.load %arg2[%c0_23, %c0_24] : memref<16x3xf32, #tpu.memory_space<vmem>>, vector<16x3xf32>
    %80 = arith.subf %79, %0 : vector<16x3xf32>
    %81 = arith.mulf %80, %80 : vector<16x3xf32>
    %cst_25 = arith.constant dense<0.000000e+00> : vector<16xf32>
    %82 = vector.multi_reduction <add>, %81, %cst_25 [1] : vector<16x3xf32> to vector<16xf32>
    %83 = vector.shape_cast %82 : vector<16xf32> to vector<16x1xf32>
    %cst_26 = arith.constant 9.99999996E-13 : f32
    %84 = vector.broadcast %cst_26 : f32 to vector<16x1xf32>
    %85 = arith.addf %83, %84 : vector<16x1xf32>
    %86 = math.sqrt %85 : vector<16x1xf32>
    %87 = vector.broadcast %86 : vector<16x1xf32> to vector<16x3xf32>
    %88 = arith.divf %80, %87 : vector<16x3xf32>
    %c0_27 = arith.constant 0 : index
    %c0_28 = arith.constant 0 : index
    %89 = vector.load %arg11[%c0_27, %c0_28] : memref<16x3xf32, #tpu.memory_space<vmem>>, vector<16x3xf32>
    %90 = arith.mulf %88, %89 : vector<16x3xf32>
    %cst_29 = arith.constant dense<0.000000e+00> : vector<16xf32>
    %91 = vector.multi_reduction <add>, %90, %cst_29 [1] : vector<16x3xf32> to vector<16xf32>
    %92 = vector.shape_cast %91 : vector<16xf32> to vector<16x1xf32>
    %c0_30 = arith.constant 0 : index
    %c0_31 = arith.constant 0 : index
    %93 = vector.load %arg13[%c0_30, %c0_31] : memref<16x1xf32, #tpu.memory_space<vmem>>, vector<16x1xf32>
    %cst_32 = arith.constant 1.000000e+00 : f32
    %94 = vector.broadcast %cst_32 : f32 to vector<16x1xf32>
    %95 = arith.subf %94, %92 : vector<16x1xf32>
    %96 = arith.mulf %93, %95 : vector<16x1xf32>
    %97 = vector.shape_cast %96 : vector<16x1xf32> to vector<1x16x1xf32>
    %cst_33 = arith.constant dense<0.000000e+00> : vector<1xf32>
    %98 = vector.multi_reduction <add>, %97, %cst_33 [1, 2] : vector<1x16x1xf32> to vector<1xf32>
    %99 = vector.shape_cast %98 : vector<1xf32> to vector<1x1x1xf32>
    %100 = vector.extract %99[0, 0, 0] : f32 from vector<1x1x1xf32>
    %c0_34 = arith.constant 0 : index
    %c0_35 = arith.constant 0 : index
    %101 = vector.load %arg5[%c0_34, %c0_35] : memref<16x2xf32, #tpu.memory_space<vmem>>, vector<16x2xf32>
    %cst_36 = arith.constant 2.000000e+00 : f32
    %102 = vector.broadcast %cst_36 : f32 to vector<16x2xf32>
    %103 = arith.mulf %102, %2 : vector<16x2xf32>
    %104 = arith.subf %101, %103 : vector<16x2xf32>
    %c0_37 = arith.constant 0 : index
    %c0_38 = arith.constant 0 : index
    %105 = vector.load %arg6[%c0_37, %c0_38] : memref<16x2xf32, #tpu.memory_space<vmem>>, vector<16x2xf32>
    %106 = arith.addf %104, %105 : vector<16x2xf32>
    %c0_39 = arith.constant 0 : index
    %c0_40 = arith.constant 0 : index
    %107 = vector.load %arg14[%c0_39, %c0_40] : memref<16x1xf32, #tpu.memory_space<vmem>>, vector<16x1xf32>
    %108 = arith.mulf %106, %106 : vector<16x2xf32>
    %cst_41 = arith.constant dense<0.000000e+00> : vector<16xf32>
    %109 = vector.multi_reduction <add>, %108, %cst_41 [1] : vector<16x2xf32> to vector<16xf32>
    %110 = vector.shape_cast %109 : vector<16xf32> to vector<16x1xf32>
    %111 = arith.mulf %107, %110 : vector<16x1xf32>
    %112 = vector.shape_cast %111 : vector<16x1xf32> to vector<1x16x1xf32>
    %cst_42 = arith.constant dense<0.000000e+00> : vector<1xf32>
    %113 = vector.multi_reduction <add>, %112, %cst_42 [1, 2] : vector<1x16x1xf32> to vector<1xf32>
    %114 = vector.shape_cast %113 : vector<1xf32> to vector<1x1x1xf32>
    %115 = vector.extract %114[0, 0, 0] : f32 from vector<1x1x1xf32>
    %116 = tpu.iota {dimensions = array<i32: 1>} : vector<1x8xi32>
    %c0_i32 = arith.constant 0 : i32
    %117 = vector.broadcast %c0_i32 : i32 to vector<1x8xi32>
    %118 = arith.cmpi eq, %116, %117 : vector<1x8xi32>
    %cst_43 = arith.constant 0.000000e+00 : f32
    %119 = vector.broadcast %14 : f32 to vector<1x8xf32>
    %120 = vector.broadcast %cst_43 : f32 to vector<1x8xf32>
    %121 = arith.select %118, %119, %120 : vector<1x8xi1>, vector<1x8xf32>
    %c1_i32 = arith.constant 1 : i32
    %122 = vector.broadcast %c1_i32 : i32 to vector<1x8xi32>
    %123 = arith.cmpi eq, %116, %122 : vector<1x8xi32>
    %cst_44 = arith.constant 0.000000e+00 : f32
    %124 = vector.broadcast %49 : f32 to vector<1x8xf32>
    %125 = vector.broadcast %cst_44 : f32 to vector<1x8xf32>
    %126 = arith.select %123, %124, %125 : vector<1x8xi1>, vector<1x8xf32>
    %127 = arith.addf %121, %126 : vector<1x8xf32>
    %c2_i32 = arith.constant 2 : i32
    %128 = vector.broadcast %c2_i32 : i32 to vector<1x8xi32>
    %129 = arith.cmpi eq, %116, %128 : vector<1x8xi32>
    %cst_45 = arith.constant 0.000000e+00 : f32
    %130 = vector.broadcast %78 : f32 to vector<1x8xf32>
    %131 = vector.broadcast %cst_45 : f32 to vector<1x8xf32>
    %132 = arith.select %129, %130, %131 : vector<1x8xi1>, vector<1x8xf32>
    %133 = arith.addf %127, %132 : vector<1x8xf32>
    %c3_i32 = arith.constant 3 : i32
    %134 = vector.broadcast %c3_i32 : i32 to vector<1x8xi32>
    %135 = arith.cmpi eq, %116, %134 : vector<1x8xi32>
    %cst_46 = arith.constant 0.000000e+00 : f32
    %136 = vector.broadcast %100 : f32 to vector<1x8xf32>
    %137 = vector.broadcast %cst_46 : f32 to vector<1x8xf32>
    %138 = arith.select %135, %136, %137 : vector<1x8xi1>, vector<1x8xf32>
    %139 = arith.addf %133, %138 : vector<1x8xf32>
    %c4_i32 = arith.constant 4 : i32
    %140 = vector.broadcast %c4_i32 : i32 to vector<1x8xi32>
    %141 = arith.cmpi eq, %116, %140 : vector<1x8xi32>
    %cst_47 = arith.constant 0.000000e+00 : f32
    %142 = vector.broadcast %115 : f32 to vector<1x8xf32>
    %143 = vector.broadcast %cst_47 : f32 to vector<1x8xf32>
    %144 = arith.select %141, %142, %143 : vector<1x8xi1>, vector<1x8xf32>
    %145 = arith.addf %139, %144 : vector<1x8xf32>
    %c0_48 = arith.constant 0 : index
    %c0_49 = arith.constant 0 : index
    %146 = vector.load %arg16[%c0_48, %c0_49] : memref<1x8xf32, #tpu.memory_space<vmem>>, vector<1x8xf32>
    tpu.vector_store %arg16[%c0_48, %c0_49], %145 {strides = array<i32>} : memref<1x8xf32, #tpu.memory_space<vmem>>, vector<1x8xf32>,
    return
  }
  func.func @transform_0(%arg0: i32) -> (i32, i32) {
    %c0_i32 = arith.constant 0 : i32
    %c0_i32_0 = arith.constant 0 : i32
    %c0_i32_1 = arith.constant 0 : i32
    return %c0_i32, %c0_i32_0 : i32, i32
  }
  func.func @transform_1(%arg0: i32) -> (i32, i32) {
    %c0_i32 = arith.constant 0 : i32
    %c0_i32_0 = arith.constant 0 : i32
    %c0_i32_1 = arith.constant 0 : i32
    return %c0_i32, %c0_i32_0 : i32, i32
  }
  func.func @transform_2(%arg0: i32) -> (i32, i32) {
    %c0_i32 = arith.constant 0 : i32
    %c0_i32_0 = arith.constant 0 : i32
    %c0_i32_1 = arith.constant 0 : i32
    return %c0_i32, %c0_i32_0 : i32, i32
  }
  func.func @transform_3(%arg0: i32) -> (i32, i32) {
    %c0_i32 = arith.constant 0 : i32
    %c0_i32_0 = arith.constant 0 : i32
    %c0_i32_1 = arith.constant 0 : i32
    return %c0_i32, %c0_i32_0 : i32, i32
  }
  func.func @transform_4(%arg0: i32) -> (i32, i32) {
    %c0_i32 = arith.constant 0 : i32
    %c0_i32_0 = arith.constant 0 : i32
    %c0_i32_1 = arith.constant 0 : i32
    return %c0_i32, %c0_i32_0 : i32, i32
  }
  func.func @transform_5(%arg0: i32) -> (i32, i32) {
    %c0_i32 = arith.constant 0 : i32
    %c0_i32_0 = arith.constant 0 : i32
    %c0_i32_1 = arith.constant 0 : i32
    return %c0_i32, %c0_i32_0 : i32, i32
  }
  func.func @transform_6(%arg0: i32) -> (i32, i32) {
    %c0_i32 = arith.constant 0 : i32
    %c0_i32_0 = arith.constant 0 : i32
    %c0_i32_1 = arith.constant 0 : i32
    return %c0_i32, %c0_i32_0 : i32, i32
  }
  func.func @transform_7(%arg0: i32) -> (i32, i32) {
    %c0_i32 = arith.constant 0 : i32
    %c0_i32_0 = arith.constant 0 : i32
    %c0_i32_1 = arith.constant 0 : i32
    return %c0_i32, %c0_i32_0 : i32, i32
  }
  func.func @transform_8(%arg0: i32) -> (i32, i32) {
    %c0_i32 = arith.constant 0 : i32
    %c0_i32_0 = arith.constant 0 : i32
    %c0_i32_1 = arith.constant 0 : i32
    return %c0_i32, %c0_i32_0 : i32, i32
  }
  func.func @transform_9(%arg0: i32) -> (i32, i32) {
    %c0_i32 = arith.constant 0 : i32
    %c0_i32_0 = arith.constant 0 : i32
    %c0_i32_1 = arith.constant 0 : i32
    return %c0_i32, %c0_i32_0 : i32, i32
  }
  func.func @transform_10(%arg0: i32) -> (i32, i32) {
    %c0_i32 = arith.constant 0 : i32
    %c0_i32_0 = arith.constant 0 : i32
    %c0_i32_1 = arith.constant 0 : i32
    return %c0_i32, %c0_i32_0 : i32, i32
  }
  func.func @transform_11(%arg0: i32) -> (i32, i32) {
    %c0_i32 = arith.constant 0 : i32
    %c0_i32_0 = arith.constant 0 : i32
    %c0_i32_1 = arith.constant 0 : i32
    return %c0_i32, %c0_i32_0 : i32, i32
  }
  func.func @transform_12(%arg0: i32) -> (i32, i32) {
    %c0_i32 = arith.constant 0 : i32
    %c0_i32_0 = arith.constant 0 : i32
    %c0_i32_1 = arith.constant 0 : i32
    return %c0_i32, %c0_i32_0 : i32, i32
  }
  func.func @transform_13(%arg0: i32) -> (i32, i32) {
    %c0_i32 = arith.constant 0 : i32
    %c0_i32_0 = arith.constant 0 : i32
    %c0_i32_1 = arith.constant 0 : i32
    return %c0_i32, %c0_i32_0 : i32, i32
  }
  func.func @transform_14(%arg0: i32) -> (i32, i32) {
    %c0_i32 = arith.constant 0 : i32
    %c0_i32_0 = arith.constant 0 : i32
    %c0_i32_1 = arith.constant 0 : i32
    return %c0_i32, %c0_i32_0 : i32, i32
  }
  func.func @transform_15(%arg0: i32) -> (i32, i32) {
    %c0_i32 = arith.constant 0 : i32
    %c0_i32_0 = arith.constant 0 : i32
    %c0_i32_1 = arith.constant 0 : i32
    return %c0_i32, %c0_i32_0 : i32, i32
  }
}

</mosaic_0001>

<llo_original>
// kernel: _fused_forward.1
$region0: #{_fused_forward.1}
  #allocation0 [shape = 'u32[]', space=smem, size = 0x4, offset = 0x4, fixed_abs, tag = 'smem constant byte address 0x4 - core index']
  #allocation1 [shape = 'u32[72,128]{1,0:T(1,128)}', space=vmem, size = 0x9000, scoped, tag = 'internal scratch']
  %s0 = inlined_call_operand.vmem [shape: f32[16,3], index: 0, kind: input, shape index: {}]
  %s1 = inlined_call_operand.vmem [shape: f32[16,3], index: 1, kind: input, shape index: {}]
  %s2 = inlined_call_operand.vmem [shape: f32[3,16], index: 2, kind: input, shape index: {}]
  %s3 = inlined_call_operand.vmem [shape: f32[16,2], index: 3, kind: input, shape index: {}]
  %s4 = inlined_call_operand.vmem [shape: f32[16,2], index: 4, kind: input, shape index: {}]
  %s5 = inlined_call_operand.vmem [shape: f32[16,2], index: 5, kind: input, shape index: {}]
  %s6 = inlined_call_operand.vmem [shape: f32[16,2], index: 6, kind: input, shape index: {}]
  %s7 = inlined_call_operand.vmem [shape: f32[3,20], index: 7, kind: input, shape index: {}]
  %s8 = inlined_call_operand.vmem [shape: f32[1,20], index: 8, kind: input, shape index: {}]
  %s9 = inlined_call_operand.vmem [shape: f32[16,16], index: 9, kind: input, shape index: {}]
  %s10 = inlined_call_operand.vmem [shape: f32[16,3], index: 10, kind: input, shape index: {}]
  %s11 = inlined_call_operand.vmem [shape: f32[16,1], index: 11, kind: input, shape index: {}]
  %s12 = inlined_call_operand.vmem [shape: f32[16,1], index: 12, kind: input, shape index: {}]
  %s13 = inlined_call_operand.vmem [shape: f32[16,1], index: 13, kind: input, shape index: {}]
  %s14 = inlined_call_operand.vmem [shape: f32[16,1], index: 14, kind: input, shape index: {}]
  %s15 = inlined_call_operand.vmem [shape: f32[1,8], index: 15, kind: output, shape index: {}]
  %s16 = sld [smem:[#allocation0]]
  $region70: #{_fused_forward.1} parent=0
    _
  %s18 = ssub.s32 1, %s16
  %s19 = scalar_select 0, %s18, %s16
  // Predicated region
  $region2: #{_fused_forward.1} parent=0 // pred_check
    _
  $region3: #{_fused_forward.1} parent=0 // pred_check_branch
    %21 = sbr.rel (0) target = $region5
  $region4: #{_fused_forward.1} parent=0 // pred_region
    _
  $region5: #{_fused_forward.1} parent=0 // pred_fallthru
    _
  // Predicated region
  $region6: #{_fused_forward.1} parent=0 // pred_check
    _
  $region7: #{_fused_forward.1} parent=0 // pred_check_branch
    %23 = sbr.rel (0) target = $region9
  $region8: #{_fused_forward.1} parent=0 // pred_region
    _
  $region9: #{_fused_forward.1} parent=0 // pred_fallthru
    _
  // Predicated region
  $region10: #{_fused_forward.1} parent=0 // pred_check
    _
  $region11: #{_fused_forward.1} parent=0 // pred_check_branch
    %25 = sbr.rel (0) target = $region13
  $region12: #{_fused_forward.1} parent=0 // pred_region
    _
  $region13: #{_fused_forward.1} parent=0 // pred_fallthru
    _
  // Predicated region
  $region14: #{_fused_forward.1} parent=0 // pred_check
    _
  $region15: #{_fused_forward.1} parent=0 // pred_check_branch
    %27 = sbr.rel (0) target = $region17
  $region16: #{_fused_forward.1} parent=0 // pred_region
    _
  $region17: #{_fused_forward.1} parent=0 // pred_fallthru
    _
  // Predicated region
  $region18: #{_fused_forward.1} parent=0 // pred_check
    _
  $region19: #{_fused_forward.1} parent=0 // pred_check_branch
    %29 = sbr.rel (0) target = $region21
  $region20: #{_fused_forward.1} parent=0 // pred_region
    _
  $region21: #{_fused_forward.1} parent=0 // pred_fallthru
    _
  // Predicated region
  $region22: #{_fused_forward.1} parent=0 // pred_check
    _
  $region23: #{_fused_forward.1} parent=0 // pred_check_branch
    %31 = sbr.rel (0) target = $region25
  $region24: #{_fused_forward.1} parent=0 // pred_region
    _
  $region25: #{_fused_forward.1} parent=0 // pred_fallthru
    _
  // Predicated region
  $region26: #{_fused_forward.1} parent=0 // pred_check
    _
  $region27: #{_fused_forward.1} parent=0 // pred_check_branch
    %33 = sbr.rel (0) target = $region29
  $region28: #{_fused_forward.1} parent=0 // pred_region
    _
  $region29: #{_fused_forward.1} parent=0 // pred_fallthru
    _
  // Predicated region
  $region30: #{_fused_forward.1} parent=0 // pred_check
    _
  $region31: #{_fused_forward.1} parent=0 // pred_check_branch
    %35 = sbr.rel (0) target = $region33
  $region32: #{_fused_forward.1} parent=0 // pred_region
    _
  $region33: #{_fused_forward.1} parent=0 // pred_fallthru
    _
  // Predicated region
  $region34: #{_fused_forward.1} parent=0 // pred_check
    _
  $region35: #{_fused_forward.1} parent=0 // pred_check_branch
    %37 = sbr.rel (0) target = $region37
  $region36: #{_fused_forward.1} parent=0 // pred_region
    _
  $region37: #{_fused_forward.1} parent=0 // pred_fallthru
    _
  // Predicated region
  $region38: #{_fused_forward.1} parent=0 // pred_check
    _
  $region39: #{_fused_forward.1} parent=0 // pred_check_branch
    %39 = sbr.rel (0) target = $region41
  $region40: #{_fused_forward.1} parent=0 // pred_region
    _
  $region41: #{_fused_forward.1} parent=0 // pred_fallthru
    _
  // Predicated region
  $region42: #{_fused_forward.1} parent=0 // pred_check
    _
  $region43: #{_fused_forward.1} parent=0 // pred_check_branch
    %41 = sbr.rel (0) target = $region45
  $region44: #{_fused_forward.1} parent=0 // pred_region
    _
  $region45: #{_fused_forward.1} parent=0 // pred_fallthru
    _
  // Predicated region
  $region46: #{_fused_forward.1} parent=0 // pred_check
    _
  $region47: #{_fused_forward.1} parent=0 // pred_check_branch
    %43 = sbr.rel (0) target = $region49
  $region48: #{_fused_forward.1} parent=0 // pred_region
    _
  $region49: #{_fused_forward.1} parent=0 // pred_fallthru
    _
  // Predicated region
  $region50: #{_fused_forward.1} parent=0 // pred_check
    _
  $region51: #{_fused_forward.1} parent=0 // pred_check_branch
    %45 = sbr.rel (0) target = $region53
  $region52: #{_fused_forward.1} parent=0 // pred_region
    _
  $region53: #{_fused_forward.1} parent=0 // pred_fallthru
    _
  // Predicated region
  $region54: #{_fused_forward.1} parent=0 // pred_check
    _
  $region55: #{_fused_forward.1} parent=0 // pred_check_branch
    %47 = sbr.rel (0) target = $region57
  $region56: #{_fused_forward.1} parent=0 // pred_region
    _
  $region57: #{_fused_forward.1} parent=0 // pred_fallthru
    _
  // Predicated region
  $region58: #{_fused_forward.1} parent=0 // pred_check
    _
  $region59: #{_fused_forward.1} parent=0 // pred_check_branch
    %49 = sbr.rel (0) target = $region61
  $region60: #{_fused_forward.1} parent=0 // pred_region
    _
  $region61: #{_fused_forward.1} parent=0 // pred_fallthru
    _
  %v50 = vld [vmem:[%s0] sm:$0xff]
  %v51 = vld [vmem:[%s0 + $0x8] sm:$0xff]
  %v52 = vld [vmem:[%s2] sm:$0x7]
  %v53 = vld [vmem:[%s3] sm:$0xff]
  %v54 = vld [vmem:[%s3 + $0x8] sm:$0xff]
  %v55 = vld [vmem:[%s14] sm:$0xff]
  %v56 = vld [vmem:[%s14 + $0x8] sm:$0xff]
  %v57 = vld [vmem:[%s6] sm:$0xff]
  %v58 = vld [vmem:[%s6 + $0x8] sm:$0xff]
  %v59 = vsub.f32 %v53, %v57
  %v60 = vsub.f32 %v54, %v58
  %v61 = vld [vmem:[%s11] sm:$0xff]
  %v62 = vld [vmem:[%s11 + $0x8] sm:$0xff]
  %v63 = vmul.f32 %v59, %v59
  %v64 = vmul.f32 %v60, %v60
  %vm65 = vcmask 15360
  %v66 = vsel %vm65, %v63, 0.0
  %67 = vadd.xlane.f32.xlu0 %v66
  %v68 = vpop.xlane.xlu0 %67
  %v69 = vsel %vm65, %v64, 0.0
  %70 = vadd.xlane.f32.xlu0 %v69
  %v71 = vpop.xlane.xlu0 %70
  %v72 = vmul.f32 %v61, %v68
  %v73 = vmul.f32 %v62, %v71
  %vm74 = vcmask 7168
  %v75 = vsel %vm74, %v72, 0.0
  %v76 = vsel %vm74, %v73, 0.0
  %v77 = vadd.f32 %v75, %v76
  %78 = vadd.xlane.f32.xlu0 %v77
  %v79 = vpop.xlane.xlu0 %78
  %v80 = vrot.slane %v79, 4
  %v81 = vadd.f32 %v79, %v80
  %v82 = vrot.slane %v81, 2
  %v83 = vadd.f32 %v81, %v82
  %v84 = vrot.slane %v83, 1
  %v85 = vadd.f32 %v83, %v84
  %s86 = vtos %v85
  %v87 = vld [vmem:[%s7] sm:$0x7]
  %89 = vset.pattern.permute.xlu0 0
  %90 = vperm.xlu0 %89, %v50
  %v91 = vpop.permute.xlu0 %90
  %94 = vset.pattern.permute.xlu0 0
  %95 = vperm.xlu0 %94, %v51
  %v96 = vpop.permute.xlu0 %95
  %v98 = vperm.slane %v87, 0
  %v99 = vsub.f32 %v91, %v98
  %v100 = vsub.f32 %v96, %v98
  %v101 = vmul.f32 %v99, %v99
  %v102 = vmul.f32 %v100, %v100
  %103 = vset.pattern.permute.xlu0 1
  %104 = vperm.xlu0 %103, %v50
  %v105 = vpop.permute.xlu0 %104
  %107 = vset.pattern.permute.xlu0 1
  %108 = vperm.xlu0 %107, %v51
  %v109 = vpop.permute.xlu0 %108
  %v111 = vperm.slane %v87, 1
  %v112 = vsub.f32 %v105, %v111
  %v113 = vsub.f32 %v109, %v111
  %v114 = vmul.f32 %v112, %v112
  %v115 = vmul.f32 %v113, %v113
  %v116 = vadd.f32 %v101, %v114
  %v117 = vadd.f32 %v102, %v115
  %118 = vset.pattern.permute.xlu0 2
  %119 = vperm.xlu0 %118, %v50
  %v120 = vpop.permute.xlu0 %119
  %122 = vset.pattern.permute.xlu0 2
  %123 = vperm.xlu0 %122, %v51
  %v124 = vpop.permute.xlu0 %123
  %v126 = vperm.slane %v87, 2
  %v127 = vsub.f32 %v120, %v126
  %v128 = vsub.f32 %v124, %v126
  %v129 = vmul.f32 %v127, %v127
  %v130 = vmul.f32 %v128, %v128
  %v131 = vadd.f32 %v116, %v129
  %v132 = vadd.f32 %v117, %v130
  %v133 = vadd.f32 %v131, 1e-20
  %v134 = vadd.f32 %v132, 1e-20
  %v135 = vrsqrt.pop %v133
  %v136 = vmul.f32 %v135, %v133
  %v137 = vmul.f32 %v136, %v135
  %v138 = vmul.f32 0.5, %v137
  %v139 = vsub.f32 1.5, %v138
  %v140 = vmul.f32 %v135, %v139
  %v141 = vmul.f32 %v133, %v140
  %vm142 = vcmp.eq.f32.partialorder %v133, inf
  %v143 = vsel %vm142, %v133, %v141
  %vm144 = vcmp.eq.f32.partialorder %v133, 0.0
  %v145 = vand.u32 %v133, 2147483648
  %v146 = vsel %vm144, %v145, %v143
  %v147 = vrsqrt.pop %v134
  %v148 = vmul.f32 %v147, %v134
  %v149 = vmul.f32 %v148, %v147
  %v150 = vmul.f32 0.5, %v149
  %v151 = vsub.f32 1.5, %v150
  %v152 = vmul.f32 %v147, %v151
  %v153 = vmul.f32 %v134, %v152
  %vm154 = vcmp.eq.f32.partialorder %v134, inf
  %v155 = vsel %vm154, %v134, %v153
  %vm156 = vcmp.eq.f32.partialorder %v134, 0.0
  %v157 = vand.u32 %v134, 2147483648
  %v158 = vsel %vm156, %v157, %v155
  %v159 = vld [vmem:[%s8] sm:$0x1]
  %v161 = vperm.slane %v159, 0
  %v163 = vsub.f32 %v161, %v146
  %v164 = vsub.f32 %v161, %v158
  %v165 = vmax.f32 %v163, 0.0
  %v166 = vmax.f32 %v164, 0.0
  %168 = vset.pattern.permute.xlu0 0
  %169 = vperm.xlu0 %168, %v55
  %v170 = vpop.permute.xlu0 %169
  %173 = vset.pattern.permute.xlu0 0
  %174 = vperm.xlu0 %173, %v56
  %v175 = vpop.permute.xlu0 %174
  %v177 = vmul.f32 %v170, %v165
  %v178 = vmul.f32 %v175, %v166
  %vm179 = vcmask 162816
  %v180 = vsel %vm179, %v177, 0.0
  %v181 = vsel %vm179, %v178, 0.0
  %v182 = vadd.f32 %v180, %v181
  %183 = vadd.xlane.f32.xlu0 %v182
  %v184 = vpop.xlane.xlu0 %183
  %v185 = vrot.slane %v184, 4
  %v186 = vadd.f32 %v184, %v185
  %v187 = vrot.slane %v186, 2
  %v188 = vadd.f32 %v186, %v187
  %v189 = vrot.slane %v188, 1
  %v190 = vadd.f32 %v188, %v189
  %s191 = vtos %v190
  %v192 = vperm.slane %v52, 0
  %v193 = vsub.f32 %v91, %v192
  %v194 = vsub.f32 %v96, %v192
  %v195 = vmul.f32 %v193, %v193
  %v196 = vmul.f32 %v194, %v194
  %v197 = vperm.slane %v52, 1
  %v198 = vsub.f32 %v105, %v197
  %v199 = vsub.f32 %v109, %v197
  %v200 = vmul.f32 %v198, %v198
  %v201 = vmul.f32 %v199, %v199
  %v202 = vadd.f32 %v195, %v200
  %v203 = vadd.f32 %v196, %v201
  %v204 = vperm.slane %v52, 2
  %v205 = vsub.f32 %v120, %v204
  %v206 = vsub.f32 %v124, %v204
  %v207 = vmul.f32 %v205, %v205
  %v208 = vmul.f32 %v206, %v206
  %v209 = vadd.f32 %v202, %v207
  %v210 = vadd.f32 %v203, %v208
  %v211 = vadd.f32 %v209, 1e-20
  %v212 = vadd.f32 %v210, 1e-20
  %v213 = vrsqrt.pop %v211
  %v214 = vmul.f32 %v213, %v211
  %v215 = vmul.f32 %v214, %v213
  %v216 = vmul.f32 0.5, %v215
  %v217 = vsub.f32 1.5, %v216
  %v218 = vmul.f32 %v213, %v217
  %v219 = vmul.f32 %v211, %v218
  %vm220 = vcmp.eq.f32.partialorder %v211, inf
  %v221 = vsel %vm220, %v211, %v219
  %vm222 = vcmp.eq.f32.partialorder %v211, 0.0
  %v223 = vand.u32 %v211, 2147483648
  %v224 = vsel %vm222, %v223, %v221
  %v225 = vrsqrt.pop %v212
  %v226 = vmul.f32 %v225, %v212
  %v227 = vmul.f32 %v226, %v225
  %v228 = vmul.f32 0.5, %v227
  %v229 = vsub.f32 1.5, %v228
  %v230 = vmul.f32 %v225, %v229
  %v231 = vmul.f32 %v212, %v230
  %vm232 = vcmp.eq.f32.partialorder %v212, inf
  %v233 = vsel %vm232, %v212, %v231
  %vm234 = vcmp.eq.f32.partialorder %v212, 0.0
  %v235 = vand.u32 %v212, 2147483648
  %v236 = vsel %vm234, %v235, %v233
  %v237 = vld [vmem:[%s9] sm:$0xff]
  %v238 = vld [vmem:[%s9 + $0x8] sm:$0xff]
  %v239 = vmul.f32 %v237, %v224
  %v240 = vmul.f32 %v238, %v236
  %vm241 = vcmask 130048
  %v242 = vsel %vm241, %v239, 0.0
  %v243 = vsel %vm241, %v240, 0.0
  %v244 = vadd.f32 %v242, %v243
  %245 = vadd.xlane.f32.xlu0 %v244
  %v246 = vpop.xlane.xlu0 %245
  %v247 = vrot.slane %v246, 4
  %v248 = vadd.f32 %v246, %v247
  %v249 = vrot.slane %v248, 2
  %v250 = vadd.f32 %v248, %v249
  %v251 = vrot.slane %v250, 1
  %v252 = vadd.f32 %v250, %v251
  %s253 = vtos %v252
  %v254 = vld [vmem:[%s1] sm:$0xff]
  %v255 = vld [vmem:[%s1 + $0x8] sm:$0xff]
  %v256 = vsub.f32 %v254, %v50
  %v257 = vsub.f32 %v255, %v51
  %v258 = vmul.f32 %v256, %v256
  %v259 = vmul.f32 %v257, %v257
  %vm260 = vcmask 23552
  %v261 = vsel %vm260, %v258, 0.0
  %262 = vadd.xlane.f32.xlu0 %v261
  %v263 = vpop.xlane.xlu0 %262
  %v264 = vsel %vm260, %v259, 0.0
  %265 = vadd.xlane.f32.xlu0 %v264
  %v266 = vpop.xlane.xlu0 %265
  %v267 = vadd.f32 %v263, 1e-12
  %v268 = vadd.f32 %v266, 1e-12
  %v269 = vrsqrt.pop %v267
  %v270 = vmul.f32 %v269, %v267
  %v271 = vmul.f32 %v270, %v269
  %v272 = vmul.f32 0.5, %v271
  %v273 = vsub.f32 1.5, %v272
  %v274 = vmul.f32 %v269, %v273
  %v275 = vmul.f32 %v267, %v274
  %vm276 = vcmp.eq.f32.partialorder %v267, inf
  %v277 = vsel %vm276, %v267, %v275
  %vm278 = vcmp.eq.f32.partialorder %v267, 0.0
  %v279 = vand.u32 %v267, 2147483648
  %v280 = vsel %vm278, %v279, %v277
  %v281 = vrsqrt.pop %v268
  %v282 = vmul.f32 %v281, %v268
  %v283 = vmul.f32 %v282, %v281
  %v284 = vmul.f32 0.5, %v283
  %v285 = vsub.f32 1.5, %v284
  %v286 = vmul.f32 %v281, %v285
  %v287 = vmul.f32 %v268, %v286
  %vm288 = vcmp.eq.f32.partialorder %v268, inf
  %v289 = vsel %vm288, %v268, %v287
  %vm290 = vcmp.eq.f32.partialorder %v268, 0.0
  %v291 = vand.u32 %v268, 2147483648
  %v292 = vsel %vm290, %v291, %v289
  %v293 = vrcp.pop %v280
  %v294 = vmul.f32 %v280, %v293
  %v295 = vsub.f32 1.0, %v294
  %v296 = vmul.f32 %v293, %v295
  %v297 = vadd.f32 %v293, %v296
  %vm298 = vweird.f32 %v280
  %vm299 = vweird.f32 %v293
  %vm300 = vmor %vm298, %vm299
  %v301 = vsel %vm300, %v293, %v297
  %v302 = vand.u32 2147483647, %v280
  %vm303 = vcmp.eq.f32.partialorder %v302, 8.507059e+37
  %v304 = vand.u32 %v280, 2147483648
  %v305 = vor.u32 1.1754944e-38, %v304
  %v306 = vsel %vm303, %v305, %v301
  %v307 = vmul.f32 %v256, %v306
  %v308 = vrcp.pop %v292
  %v309 = vmul.f32 %v292, %v308
  %v310 = vsub.f32 1.0, %v309
  %v311 = vmul.f32 %v308, %v310
  %v312 = vadd.f32 %v308, %v311
  %vm313 = vweird.f32 %v292
  %vm314 = vweird.f32 %v308
  %vm315 = vmor %vm313, %vm314
  %v316 = vsel %vm315, %v308, %v312
  %v317 = vand.u32 2147483647, %v292
  %vm318 = vcmp.eq.f32.partialorder %v317, 8.507059e+37
  %v319 = vand.u32 %v292, 2147483648
  %v320 = vor.u32 1.1754944e-38, %v319
  %v321 = vsel %vm318, %v320, %v316
  %v322 = vmul.f32 %v257, %v321
  %v323 = vld [vmem:[%s10] sm:$0xff]
  %v324 = vld [vmem:[%s10 + $0x8] sm:$0xff]
  %v325 = vmul.f32 %v307, %v323
  %v326 = vmul.f32 %v322, %v324
  %v327 = vsel %vm260, %v325, 0.0
  %328 = vadd.xlane.f32.xlu0 %v327
  %v329 = vpop.xlane.xlu0 %328
  %v330 = vsel %vm260, %v326, 0.0
  %331 = vadd.xlane.f32.xlu0 %v330
  %v332 = vpop.xlane.xlu0 %331
  %v333 = vld [vmem:[%s12] sm:$0xff]
  %v334 = vld [vmem:[%s12 + $0x8] sm:$0xff]
  %v335 = vsub.f32 1.0, %v329
  %v336 = vsub.f32 1.0, %v332
  %v337 = vmul.f32 %v333, %v335
  %v338 = vmul.f32 %v334, %v336
  %v339 = vsel %vm74, %v337, 0.0
  %v340 = vsel %vm74, %v338, 0.0
  %v341 = vadd.f32 %v339, %v340
  %342 = vadd.xlane.f32.xlu0 %v341
  %v343 = vpop.xlane.xlu0 %342
  %v344 = vrot.slane %v343, 4
  %v345 = vadd.f32 %v343, %v344
  %v346 = vrot.slane %v345, 2
  %v347 = vadd.f32 %v345, %v346
  %v348 = vrot.slane %v347, 1
  %v349 = vadd.f32 %v347, %v348
  %s350 = vtos %v349
  %v351 = vld [vmem:[%s4] sm:$0xff]
  %v352 = vld [vmem:[%s4 + $0x8] sm:$0xff]
  %v353 = vmul.f32 %v53, 2.0
  %v354 = vmul.f32 %v54, 2.0
  %v355 = vsub.f32 %v351, %v353
  %v356 = vsub.f32 %v352, %v354
  %v357 = vld [vmem:[%s5] sm:$0xff]
  %v358 = vld [vmem:[%s5 + $0x8] sm:$0xff]
  %v359 = vadd.f32 %v355, %v357
  %v360 = vadd.f32 %v356, %v358
  %v361 = vld [vmem:[%s13] sm:$0xff]
  %v362 = vld [vmem:[%s13 + $0x8] sm:$0xff]
  %v363 = vmul.f32 %v359, %v359
  %v364 = vmul.f32 %v360, %v360
  %v365 = vsel %vm65, %v363, 0.0
  %366 = vadd.xlane.f32.xlu0 %v365
  %v367 = vpop.xlane.xlu0 %366
  %v368 = vsel %vm65, %v364, 0.0
  %369 = vadd.xlane.f32.xlu0 %v368
  %v370 = vpop.xlane.xlu0 %369
  %v371 = vmul.f32 %v361, %v367
  %v372 = vmul.f32 %v362, %v370
  %v373 = vsel %vm74, %v371, 0.0
  %v374 = vsel %vm74, %v372, 0.0
  %v375 = vadd.f32 %v373, %v374
  %376 = vadd.xlane.f32.xlu0 %v375
  %v377 = vpop.xlane.xlu0 %376
  %v378 = vrot.slane %v377, 4
  %v379 = vadd.f32 %v377, %v378
  %v380 = vrot.slane %v379, 2
  %v381 = vadd.f32 %v379, %v380
  %v382 = vrot.slane %v381, 1
  %v383 = vadd.f32 %v381, %v382
  %s384 = vtos %v383
  %v385 = vlaneseq
  %v386 = vand.u32 %v385, 127
  %vm387 = vcmp.eq.s32.totalorder %v386, 0
  %v388 = vstv %s86
  %v389 = vsel %vm387, %v388, 0.0
  %vm390 = vcmp.eq.s32.totalorder %v386, 1
  %v391 = vstv %s191
  %v392 = vsel %vm390, %v391, 0.0
  %v393 = vadd.f32 %v389, %v392
  %vm394 = vcmp.eq.s32.totalorder %v386, 2
  %v395 = vstv %s253
  %v396 = vsel %vm394, %v395, 0.0
  %v397 = vadd.f32 %v393, %v396
  %vm398 = vcmp.eq.s32.totalorder %v386, 3
  %v399 = vstv %s350
  %v400 = vsel %vm398, %v399, 0.0
  %v401 = vadd.f32 %v397, %v400
  %vm402 = vcmp.eq.s32.totalorder %v386, 4
  %v403 = vstv %s384
  %v404 = vsel %vm402, %v403, 0.0
  %v405 = vadd.f32 %v401, %v404
  %vm406 = vcmask 57344
  %407 = vst.msk [vmem:[%s15] sm:$0x1] %vm406, %v405
  // Predicated region
  $region62: #{_fused_forward.1} parent=0 // pred_check
    _
  $region63: #{_fused_forward.1} parent=0 // pred_check_branch
    %409 = sbr.rel (0) target = $region65
  $region64: #{_fused_forward.1} parent=0 // pred_region
    _
  $region65: #{_fused_forward.1} parent=0 // pred_fallthru
    _
  // Predicated region
  $region66: #{_fused_forward.1} parent=0 // pred_check
    _
  $region67: #{_fused_forward.1} parent=0 // pred_check_branch
    %411 = sbr.rel (0) target = $region69
  $region68: #{_fused_forward.1} parent=0 // pred_region
    _
  $region69: #{_fused_forward.1} parent=0 // pred_fallthru
    _

</llo_original>
